<compile_context>
chip_gen: v7x
topology: tpu7x:2x2x1
jax: 0.10.0
libtpu: 0.0.40
codegen_flags: <defaults>
</compile_context>

<pallas_src>
import functools

import jax
import jax.numpy as jnp
import numpy as np
from jax import lax
from jax.experimental import pallas as pl
from jax.experimental.pallas import tpu as pltpu

_EPS = 1e-5                              # torch.nn.LayerNorm default eps
_TARGET_BLOCK_BYTES = 4 * 1024 * 1024    # ~4 MiB blocks: <10% per-step overhead on v7x HBM
_MAX_VMEM_BYTES = 64 * 1024 * 1024       # v7x physical ceiling (v5e/v6e have 128 MiB)


def _round_up(v, m):
    return ((v + m - 1) // m) * m


def _vmem_limit(*block_bytes):
    # Double-buffered in + out blocks + slack for params / compiler scratch.
    need = 2 * sum(int(b) for b in block_bytes) + (4 << 20)
    return int(min(max(need, 16 << 20), _MAX_VMEM_BYTES))


# ----------------------------- kernels -------------------------------------


def _sublane_norm_kernel(x_ref, g_ref, b_ref, o_ref, *, inv_n):
    # x_ref: (tile_b, n_feat, tile_h) -- normalize over axis=1 (sublanes),
    # lanes (tile_h) stay dense. Single-pass moments: no `centered` temporary.
    x = x_ref[...].astype(jnp.float32)
    s1 = jnp.sum(x, axis=1, keepdims=True)
    s2 = jnp.sum(x * x, axis=1, keepdims=True)
    mean = s1 * inv_n
    var = jnp.maximum(s2 * inv_n - mean * mean, 0.0)     # biased var, clamp cancellation
    inv = lax.rsqrt(var + _EPS)                          # EUP rsqrt
    g = g_ref[...].astype(jnp.float32)                   # (n_feat, 1): broadcasts over b, lanes
    b = b_ref[...].astype(jnp.float32)
    o_ref[...] = ((x - mean) * inv * g + b).astype(o_ref.dtype)


def _lane_norm_kernel(x_ref, g_ref, b_ref, o_ref, *, inv_n):
    # x_ref: (tile_b, n_feat) -- normalize over the last (lane) axis; the
    # cross-lane reduction rides the XLU slot, which is otherwise idle here.
    x = x_ref[...].astype(jnp.float32)
    s1 = jnp.sum(x, axis=-1, keepdims=True)
    s2 = jnp.sum(x * x, axis=-1, keepdims=True)
    mean = s1 * inv_n
    var = jnp.maximum(s2 * inv_n - mean * mean, 0.0)
    inv = lax.rsqrt(var + _EPS)
    g = g_ref[...].astype(jnp.float32)                   # (1, n_feat)
    b = b_ref[...].astype(jnp.float32)
    o_ref[...] = ((x - mean) * inv * g + b).astype(o_ref.dtype)


# --------------------------- tile selection ---------------------------------


def _pick_sublane_tiles(B, n_feat, hidden, itemsize):
    """Static tile selection for the (B, n_feat, hidden) sublane-reduction path."""
    if hidden <= 128:
        # Full (small) lane extent; lane-sparse stores only for genuinely small hidden.
        # TODO(synk): a packed lane layout could recover lane density for hidden < 128.
        tile_h = hidden
    else:
        budget_h = (_TARGET_BLOCK_BYTES // max(n_feat * itemsize, 1)) // 128 * 128
        budget_h = max(128, budget_h)
        tile_h = min(_round_up(hidden, 128), budget_h)

    row_bytes = n_feat * tile_h * itemsize
    tile_b = int(max(1, min(B, _TARGET_BLOCK_BYTES // max(row_bytes, 1))))

    def grids(tb, th):
        return pl.cdiv(B, tb), pl.cdiv(hidden, th)

    grid_b, grid_h = grids(tile_b, tile_h)

    # v7x megacore: make sure both TensorCores get work (>=2 steps).
    if grid_b * grid_h < 2:
        if tile_b > 1:
            tile_b = pl.cdiv(B, 2)
        elif hidden > 128 and tile_h > 128:
            tile_h = max(128, _round_up(pl.cdiv(hidden, 2), 128))
        grid_b, grid_h = grids(tile_b, tile_h)

    # Prefer an even total step count so the two TCs stay balanced.
    if grid_b * grid_h >= 2 and (grid_b * grid_h) % 2 == 1:
        if grid_b == 1 and tile_b > 1:
            tile_b = pl.cdiv(B, 2)
        elif grid_h == 1 and hidden > 128 and tile_h > 128:
            tile_h = max(128, _round_up(pl.cdiv(hidden, 2), 128))
        grid_b, grid_h = grids(tile_b, tile_h)

    return tile_b, tile_h, grid_b, grid_h


def _pick_lane_tiles(B, n_feat, itemsize):
    """Static tile selection for the (B, n_feat) lane-reduction path."""
    row_bytes = max(n_feat * itemsize, 1)
    tile_b = int(max(1, min(B, _TARGET_BLOCK_BYTES // row_bytes)))
    if tile_b < B:
        tile_b = max(8, (tile_b // 8) * 8)      # sublane dim: multiple of 8 unless full extent
    grid_b = pl.cdiv(B, tile_b)
    # Megacore: >=2 steps whenever we can keep the sublane tile a multiple of 8.
    if grid_b < 2 and B > 8:
        tile_b = max(8, _round_up(pl.cdiv(B, 2), 8))
        grid_b = pl.cdiv(B, tile_b)
    return tile_b, grid_b


# ------------------------------ wrapper -------------------------------------


@functools.partial(jax.jit, static_argnames=("axis",))
def per_feature_norm(x, gamma, beta, *, axis):
    """LayerNorm over `axis` of x with affine gamma/beta of shape [x.shape[axis]]."""
    orig_ndim = x.ndim
    ax = axis % orig_ndim
    n_feat = x.shape[ax]
    itemsize = jnp.dtype(x.dtype).itemsize
    inv_n = 1.0 / float(n_feat)

    if ax == orig_ndim - 1:
        # ---- lane-reduction path: no transpose, no pad ----
        lead = x.shape[:-1]
        B = int(np.prod(lead)) if lead else 1
        x2 = x.reshape(B, n_feat)
        tile_b, grid_b = _pick_lane_tiles(B, n_feat, itemsize)
        block_bytes = tile_b * n_feat * itemsize

        out2 = pl.pallas_call(
            functools.partial(_lane_norm_kernel, inv_n=inv_n),
            out_shape=jax.ShapeDtypeStruct((B, n_feat), x.dtype),
            grid_spec=pltpu.PrefetchScalarGridSpec(
                num_scalar_prefetch=0,
                grid=(grid_b,),
                in_specs=[
                    pl.BlockSpec((tile_b, n_feat), lambda i: (i, 0)),
                    pl.BlockSpec((1, n_feat), lambda i: (0, 0)),
                    pl.BlockSpec((1, n_feat), lambda i: (0, 0)),
                ],
                out_specs=pl.BlockSpec((tile_b, n_feat), lambda i: (i, 0)),
            ),
            compiler_params=pltpu.CompilerParams(
                dimension_semantics=("parallel",),
                vmem_limit_bytes=_vmem_limit(block_bytes, block_bytes),
            ),
        )(x2, gamma.reshape(1, n_feat), beta.reshape(1, n_feat))
        return out2.reshape(x.shape)

    # ---- sublane-reduction path (canonical: x = [batch, n_features, hidden], axis = ndim-2) ----
    moved = ax != orig_ndim - 2
    # TODO(synk): axes other than ndim-1 / ndim-2 still pay one moveaxis round-trip.
    xm = jnp.moveaxis(x, ax, orig_ndim - 2) if moved else x
    lead = xm.shape[:-2]
    hidden = xm.shape[-1]
    B = int(np.prod(lead)) if lead else 1
    x3 = xm.reshape(B, n_feat, hidden)          # leading-dim collapse only, no repack

    tile_b, tile_h, grid_b, grid_h = _pick_sublane_tiles(B, n_feat, hidden, itemsize)
    block_bytes = tile_b * n_feat * tile_h * itemsize

    out3 = pl.pallas_call(
        functools.partial(_sublane_norm_kernel, inv_n=inv_n),
        out_shape=jax.ShapeDtypeStruct((B, n_feat, hidden), x.dtype),
        grid_spec=pltpu.PrefetchScalarGridSpec(
            num_scalar_prefetch=0,
            grid=(grid_b, grid_h),
            in_specs=[
                pl.BlockSpec((tile_b, n_feat, tile_h), lambda i, j: (i, 0, j)),
                pl.BlockSpec((n_feat, 1), lambda i, j: (0, 0)),
                pl.BlockSpec((n_feat, 1), lambda i, j: (0, 0)),
            ],
            out_specs=pl.BlockSpec((tile_b, n_feat, tile_h), lambda i, j: (i, 0, j)),
        ),
        compiler_params=pltpu.CompilerParams(
            dimension_semantics=("parallel", "parallel"),
            vmem_limit_bytes=_vmem_limit(block_bytes, block_bytes),
        ),
    )(x3, gamma.reshape(n_feat, 1), beta.reshape(n_feat, 1))

    out = out3.reshape(*lead, n_feat, hidden)
    if moved:
        out = jnp.moveaxis(out, orig_ndim - 2, ax)
    return out


# ------------------------------ reference -----------------------------------


def _reference(x, gamma, beta, axis):
    xt = jnp.swapaxes(x, -1, axis)
    mean = jnp.mean(xt, axis=-1, keepdims=True)
    var = jnp.mean((xt - mean) ** 2, axis=-1, keepdims=True)
    y = (xt - mean) / jnp.sqrt(var + _EPS) * gamma + beta
    return jnp.swapaxes(y, -1, axis)


if __name__ == "__main__":
    # Canonical module usage: x is [batch, n_features, hidden], normalized over axis=1.
    batch, n_features, hidden = 2, 8, 32
    key = jax.random.PRNGKey(0)
    x = jax.random.normal(key, (batch, n_features, hidden), dtype=jnp.float32)

    # PyTorch LayerNorm default init: weight=1, bias=0.
    gamma = jnp.ones((n_features,), dtype=jnp.float32)
    beta = jnp.zeros((n_features,), dtype=jnp.float32)

    out = per_feature_norm(x, gamma, beta, axis=1)
    out = jax.block_until_ready(out)
    np.testing.assert_allclose(np.asarray(out), np.asarray(_reference(x, gamma, beta, 1)),
                               rtol=1e-5, atol=1e-5)

    # Also exercise the lane-reduction path (axis == last dim, no transpose).
    n_feat_last = x.shape[-1]
    gamma_l = jnp.ones((n_feat_last,), dtype=jnp.float32)
    beta_l = jnp.zeros((n_feat_last,), dtype=jnp.float32)
    out_l = jax.block_until_ready(per_feature_norm(x, gamma_l, beta_l, axis=-1))
    np.testing.assert_allclose(np.asarray(out_l),
                               np.asarray(_reference(x, gamma_l, beta_l, -1)),
                               rtol=1e-5, atol=1e-5)

    print("KERNEL_OK")
</pallas_src>

<mosaic_0001>
module attributes {stable_mosaic.version = 11 : i64} {
  func.func @_sublane_norm_kernel(%arg0: i32, %arg1: i32, %arg2: memref<1x8x32xf32, #tpu.memory_space<vmem>>, %arg3: memref<8x1xf32, #tpu.memory_space<vmem>>, %arg4: memref<8x1xf32, #tpu.memory_space<vmem>>, %arg5: memref<1x8x32xf32, #tpu.memory_space<vmem>>) attributes {dimension_semantics = [#tpu.dimension_semantics<parallel>, #tpu.dimension_semantics<parallel>], iteration_bounds = array<i64: 2, 1>, scalar_prefetch = 0 : i64, scratch_operands = 0 : i64, tpu.core_type = #tpu.core_type<tc>, window_params = [{transform_indices = @transform_0, window_bounds = array<i64: 1, 8, 32>}, {pipeline_mode = #tpu.pipeline_mode<synchronous>, transform_indices = @transform_1, window_bounds = array<i64: 8, 1>}, {pipeline_mode = #tpu.pipeline_mode<synchronous>, transform_indices = @transform_2, window_bounds = array<i64: 8, 1>}, {transform_indices = @transform_3, window_bounds = array<i64: 1, 8, 32>}]} {
    %c0 = arith.constant 0 : index
    %c0_0 = arith.constant 0 : index
    %c0_1 = arith.constant 0 : index
    %0 = vector.load %arg2[%c0, %c0_0, %c0_1] : memref<1x8x32xf32, #tpu.memory_space<vmem>>, vector<1x8x32xf32>
    %cst = arith.constant dense<0.000000e+00> : vector<1x32xf32>
    %1 = vector.multi_reduction <add>, %0, %cst [1] : vector<1x8x32xf32> to vector<1x32xf32>
    %2 = vector.shape_cast %1 : vector<1x32xf32> to vector<1x1x32xf32>
    %3 = arith.mulf %0, %0 : vector<1x8x32xf32>
    %cst_2 = arith.constant dense<0.000000e+00> : vector<1x32xf32>
    %4 = vector.multi_reduction <add>, %3, %cst_2 [1] : vector<1x8x32xf32> to vector<1x32xf32>
    %5 = vector.shape_cast %4 : vector<1x32xf32> to vector<1x1x32xf32>
    %cst_3 = arith.constant 1.250000e-01 : f32
    %6 = vector.broadcast %cst_3 : f32 to vector<1x1x32xf32>
    %7 = arith.mulf %2, %6 : vector<1x1x32xf32>
    %cst_4 = arith.constant 1.250000e-01 : f32
    %8 = vector.broadcast %cst_4 : f32 to vector<1x1x32xf32>
    %9 = arith.mulf %5, %8 : vector<1x1x32xf32>
    %10 = arith.mulf %7, %7 : vector<1x1x32xf32>
    %11 = arith.subf %9, %10 : vector<1x1x32xf32>
    %cst_5 = arith.constant 0.000000e+00 : f32
    %12 = vector.broadcast %cst_5 : f32 to vector<1x1x32xf32>
    %13 = arith.maximumf %11, %12 : vector<1x1x32xf32>
    %cst_6 = arith.constant 9.99999974E-6 : f32
    %14 = vector.broadcast %cst_6 : f32 to vector<1x1x32xf32>
    %15 = arith.addf %13, %14 : vector<1x1x32xf32>
    %16 = math.rsqrt %15 : vector<1x1x32xf32>
    %c0_7 = arith.constant 0 : index
    %c0_8 = arith.constant 0 : index
    %17 = vector.load %arg3[%c0_7, %c0_8] : memref<8x1xf32, #tpu.memory_space<vmem>>, vector<8x1xf32>
    %c0_9 = arith.constant 0 : index
    %c0_10 = arith.constant 0 : index
    %18 = vector.load %arg4[%c0_9, %c0_10] : memref<8x1xf32, #tpu.memory_space<vmem>>, vector<8x1xf32>
    %19 = vector.broadcast %7 : vector<1x1x32xf32> to vector<1x8x32xf32>
    %20 = arith.subf %0, %19 : vector<1x8x32xf32>
    %21 = vector.broadcast %16 : vector<1x1x32xf32> to vector<1x8x32xf32>
    %22 = arith.mulf %20, %21 : vector<1x8x32xf32>
    %23 = vector.shape_cast %17 : vector<8x1xf32> to vector<1x8x1xf32>
    %24 = vector.broadcast %23 : vector<1x8x1xf32> to vector<1x8x32xf32>
    %25 = arith.mulf %22, %24 : vector<1x8x32xf32>
    %26 = vector.shape_cast %18 : vector<8x1xf32> to vector<1x8x1xf32>
    %27 = vector.broadcast %26 : vector<1x8x1xf32> to vector<1x8x32xf32>
    %28 = arith.addf %25, %27 : vector<1x8x32xf32>
    %c0_11 = arith.constant 0 : index
    %c0_12 = arith.constant 0 : index
    %c0_13 = arith.constant 0 : index
    %29 = vector.load %arg5[%c0_11, %c0_12, %c0_13] : memref<1x8x32xf32, #tpu.memory_space<vmem>>, vector<1x8x32xf32>
    tpu.vector_store %arg5[%c0_11, %c0_12, %c0_13], %28 {strides = array<i32>} : memref<1x8x32xf32, #tpu.memory_space<vmem>>, vector<1x8x32xf32>,
    return
  }
  func.func @transform_0(%arg0: i32, %arg1: i32) -> (i32, i32, i32) {
    %c0_i32 = arith.constant 0 : i32
    %c0_i32_0 = arith.constant 0 : i32
    return %arg0, %c0_i32, %arg1 : i32, i32, i32
  }
  func.func @transform_1(%arg0: i32, %arg1: i32) -> (i32, i32) {
    %c0_i32 = arith.constant 0 : i32
    %c0_i32_0 = arith.constant 0 : i32
    %c0_i32_1 = arith.constant 0 : i32
    return %c0_i32, %c0_i32_0 : i32, i32
  }
  func.func @transform_2(%arg0: i32, %arg1: i32) -> (i32, i32) {
    %c0_i32 = arith.constant 0 : i32
    %c0_i32_0 = arith.constant 0 : i32
    %c0_i32_1 = arith.constant 0 : i32
    return %c0_i32, %c0_i32_0 : i32, i32
  }
  func.func @transform_3(%arg0: i32, %arg1: i32) -> (i32, i32, i32) {
    %c0_i32 = arith.constant 0 : i32
    %c0_i32_0 = arith.constant 0 : i32
    return %arg0, %c0_i32, %arg1 : i32, i32, i32
  }
}

</mosaic_0001>

<llo_original>
// kernel: per_feature_norm.1
$region0: #{per_feature_norm.1}
  #allocation0 [shape = 'u32[]', space=smem, size = 0x4, offset = 0x4, fixed_abs, tag = 'smem constant byte address 0x4 - core index']
  #allocation1 [shape = 'u32[144,128]{1,0:T(1,128)}', space=vmem, size = 0x12000, scoped, tag = 'internal scratch']
  %s0 = inlined_call_operand.vmem [shape: f32[2,8,32], index: 0, kind: input, shape index: {}]
  %s1 = inlined_call_operand.vmem [shape: f32[8,1], index: 1, kind: input, shape index: {}]
  %s2 = inlined_call_operand.vmem [shape: f32[8,1], index: 2, kind: input, shape index: {}]
  %s3 = inlined_call_operand.hbm [shape: f32[2,8,32], index: 3, kind: output, shape index: {}]
  %s4 = sld [smem:[#allocation0]]
  $region45: #{per_feature_norm.1} parent=0
    _
  %s6 = ssub.s32 1, %s4
  %s7 = scalar_select 0, %s6, %s4
  $region1: #{per_feature_norm.1} parent=0
    #allocation2 [shape = 'u8[8192]{0}', space=vmem, size = 0x2000, scoped, tag = 'output window, operand 0']
    #allocation3 [shape = 's32[2]{0}', space=sflag, size = 0x8, scoped, tag = 'scoped memory for per_feature_norm.1']
    %8 = vsyncpa [#allocation3], 0
    %s9 = scalar_lea.sflag [#allocation3], 1
    %10 = vsyncpa %s9, 0
    loop: start=0, step=1, limit=4
    $region2: #{per_feature_norm.1} parent=1 // loop_pre_header
      _
    $region3: #{per_feature_norm.1} parent=1 // loop_header
      %s12 = sphi 0, %s16
      %p13 = scmp.ge.s32.totalorder %s12, 4
      %s19 = sphi 0, %s31
      %s20 = sphi 0, %s27
      %s21 = sphi 0, %s19
      %s22 = sphi 0, %s20
      %s23 = sphi 0, %s21
      %s24 = sphi 0, %s22
      %s36 = sphi 0, %s38
      %s39 = sphi 0, %s36
      %s40 = sphi 0, %s39
      %s56 = sphi 0, %s40
      %s60 = sphi 0, %s60
      %s62 = sphi 0, %s60
      %s63 = sphi 0, %s62
      %s77 = sphi 0, %s63
      %s81 = sphi 0, %s81
      %s83 = sphi 0, %s81
      %s84 = sphi 0, %s83
      %s98 = sphi 0, %s84
      %s106 = sphi 0, %s108
      %s109 = sphi 0, %s106
      %s110 = sphi 0, %s109
      %s126 = sphi 0, %s110
    $region4: #{per_feature_norm.1} parent=1 // loop_header_branch
      %15 = sbr.rel (%p13) target = $region8
    $region5: #{per_feature_norm.1} parent=1 // loop_body
      %s17 = ssub.s32 %s12, 1
      %s18 = ssub.s32 %s12, 2
      %s25 = sadd.s32 1, %s20
      %p26 = scmp.ge.s32.totalorder %s25, 1
      %s27 = scalar_select %p26, 0, %s25
      %s28 = sadd.s32 1, %s19
      %s29 = scalar_select %p26, %s28, %s19
      %p30 = scmp.ge.s32.totalorder %s29, 2
      %s31 = scalar_select %p30, 0, %s29
      %s32 = ssub.s32 %s19, %s31
      %s33 = ssub.s32 %s20, %s27
      %s34 = sor.u32 %s32, %s33
      %p35 = scmp.eq.s32.totalorder %s34, 0
      %s37 = sadd.s32 %s36, 1
      %s38 = scalar_select %p35, %s36, %s37
      %p41 = pneg %p35
      %p42 = scmp.eq.s32.totalorder %s12, 1
      %p43 = por %p41, %p42
      %p44 = scmp.ne.s32.totalorder %s36, %s39
      %p45 = scmp.eq.s32.totalorder %s12, 0
      %p46 = por %p44, %p45
      %p47 = scmp.ne.s32.totalorder %s36, %s39
      %p48 = scmp.eq.s32.totalorder %s17, 1
      %p49 = por %p47, %p48
      %p50 = scmp.ne.s32.totalorder %s39, %s40
      %p51 = scmp.eq.s32.totalorder %s17, 0
      %p52 = por %p50, %p51
      %p53 = scmp.ne.s32.totalorder %s39, %s40
      %p54 = scmp.eq.s32.totalorder %s18, 1
      %p55 = por %p53, %p54
      %p57 = scmp.ne.s32.totalorder %s40, %s56
      %p58 = scmp.eq.s32.totalorder %s18, 0
      %p59 = por %p57, %p58
      %s61 = sadd.s32 %s60, 1
      %p64 = scmp.eq.s32.totalorder %s12, 1
      %p65 = scmp.ne.s32.totalorder %s60, %s62
      %p66 = scmp.eq.s32.totalorder %s12, 0
      %p67 = por %p65, %p66
      %p68 = scmp.ne.s32.totalorder %s60, %s62
      %p69 = scmp.eq.s32.totalorder %s17, 1
      %p70 = por %p68, %p69
      %p71 = scmp.ne.s32.totalorder %s62, %s63
      %p72 = scmp.eq.s32.totalorder %s17, 0
      %p73 = por %p71, %p72
      %p74 = scmp.ne.s32.totalorder %s62, %s63
      %p75 = scmp.eq.s32.totalorder %s18, 1
      %p76 = por %p74, %p75
      %p78 = scmp.ne.s32.totalorder %s63, %s77
      %p79 = scmp.eq.s32.totalorder %s18, 0
      %p80 = por %p78, %p79
      %s82 = sadd.s32 %s81, 1
      %p85 = scmp.eq.s32.totalorder %s12, 1
      %p86 = scmp.ne.s32.totalorder %s81, %s83
      %p87 = scmp.eq.s32.totalorder %s12, 0
      %p88 = por %p86, %p87
      %p89 = scmp.ne.s32.totalorder %s81, %s83
      %p90 = scmp.eq.s32.totalorder %s17, 1
      %p91 = por %p89, %p90
      %p92 = scmp.ne.s32.totalorder %s83, %s84
      %p93 = scmp.eq.s32.totalorder %s17, 0
      %p94 = por %p92, %p93
      %p95 = scmp.ne.s32.totalorder %s83, %s84
      %p96 = scmp.eq.s32.totalorder %s18, 1
      %p97 = por %p95, %p96
      %p99 = scmp.ne.s32.totalorder %s84, %s98
      %p100 = scmp.eq.s32.totalorder %s18, 0
      %p101 = por %p99, %p100
      %s102 = ssub.s32 %s19, %s31
      %s103 = ssub.s32 %s20, %s27
      %s104 = sor.u32 %s102, %s103
      %p105 = scmp.eq.s32.totalorder %s104, 0
      %s107 = sadd.s32 %s106, 1
      %s108 = scalar_select %p105, %s106, %s107
      %p111 = pneg %p105
      %p112 = scmp.eq.s32.totalorder %s12, 1
      %p113 = por %p111, %p112
      %p114 = scmp.ne.s32.totalorder %s106, %s109
      %p115 = scmp.eq.s32.totalorder %s12, 0
      %p116 = por %p114, %p115
      %p117 = scmp.ne.s32.totalorder %s106, %s109
      %p118 = scmp.eq.s32.totalorder %s17, 1
      %p119 = por %p117, %p118
      %p120 = scmp.ne.s32.totalorder %s109, %s110
      %p121 = scmp.eq.s32.totalorder %s17, 0
      %p122 = por %p120, %p121
      %p123 = scmp.ne.s32.totalorder %s109, %s110
      %p124 = scmp.eq.s32.totalorder %s18, 1
      %p125 = por %p123, %p124
      %p127 = scmp.ne.s32.totalorder %s110, %s126
      %p128 = scmp.eq.s32.totalorder %s18, 0
      %p129 = por %p127, %p128
      %p130 = scmp.le.s32.totalorder 1, %s12
      %p131 = scmp.lt.s32.totalorder %s12, 3
      %p132 = pnand %p130, %p131
      %p133 = pneg %p132
      // Predicated region
      $region9: #{per_feature_norm.1} parent=5 // pred_check
        _
      $region10: #{per_feature_norm.1} parent=5 // pred_check_branch
        %135 = sbr.rel (%p132) target = $region12
      $region11: #{per_feature_norm.1} parent=5 // pred_region
        %s136 = ssub.s32 %s12, 1
        // Predicated region
        $region13: #{per_feature_norm.1} parent=11 // pred_check
          %p137 = pneg %p73
        $region14: #{per_feature_norm.1} parent=11 // pred_check_branch
          %139 = sbr.rel (%p137) target = $region16
        $region15: #{per_feature_norm.1} parent=11 // pred_region
          _
        $region16: #{per_feature_norm.1} parent=11 // pred_fallthru
          _
        // Predicated region
        $region17: #{per_feature_norm.1} parent=11 // pred_check
          %p140 = pneg %p94
        $region18: #{per_feature_norm.1} parent=11 // pred_check_branch
          %142 = sbr.rel (%p140) target = $region20
        $region19: #{per_feature_norm.1} parent=11 // pred_region
          _
        $region20: #{per_feature_norm.1} parent=11 // pred_fallthru
          _
      $region12: #{per_feature_norm.1} parent=5 // pred_fallthru
        _
      %p143 = scmp.lt.s32.totalorder %s12, 2
      // Predicated region
      $region21: #{per_feature_norm.1} parent=5 // pred_check
        %p144 = pneg %p143
      $region22: #{per_feature_norm.1} parent=5 // pred_check_branch
        %146 = sbr.rel (%p144) target = $region24
      $region23: #{per_feature_norm.1} parent=5 // pred_region
        // Predicated region
        $region25: #{per_feature_norm.1} parent=23 // pred_check
          %p147 = pneg %p46
        $region26: #{per_feature_norm.1} parent=23 // pred_check_branch
          %149 = sbr.rel (%p147) target = $region28
        $region27: #{per_feature_norm.1} parent=23 // pred_region
          %p150 = scmp.lt.s32.totalorder %s19, 1
          %s151 = scalar_select %p150, %s19, 1
          %p152 = scmp.lt.s32.totalorder %s20, 0
          %s153 = scalar_select %p152, %s20, 0
          %s154 = sadd.s32 %s153, %s151
          %s155 = smul.addr %s154, 8
          %s156 = scalar_lea.vmem %s0, %s155
        $region28: #{per_feature_norm.1} parent=23 // pred_fallthru
          _
      $region24: #{per_feature_norm.1} parent=5 // pred_fallthru
        _
      %p157 = scmp.le.s32.totalorder 1, %s12
      %p158 = scmp.lt.s32.totalorder %s12, 3
      %p159 = pnand %p157, %p158
      %p160 = pneg %p159
      // Predicated region
      $region29: #{per_feature_norm.1} parent=5 // pred_check
        _
      $region30: #{per_feature_norm.1} parent=5 // pred_check_branch
        %162 = sbr.rel (%p159) target = $region32
      $region31: #{per_feature_norm.1} parent=5 // pred_region
        %s163 = ssub.s32 %s12, 1
        %p164 = scmp.lt.s32.totalorder %s21, 1
        %s165 = scalar_select %p164, %s21, 1
        %p166 = scmp.lt.s32.totalorder %s22, 0
        %s167 = scalar_select %p166, %s22, 0
        %s168 = sadd.s32 %s167, %s165
        %s169 = smul.addr %s168, 8
        %s170 = scalar_lea.vmem %s0, %s169
        %p171 = pneg %p52
        %p172 = pneg %p49
        %p173 = pneg %p73
        %p174 = pneg %p70
        %p175 = pneg %p94
        %p176 = pneg %p91
        %p177 = pneg %p122
        %p178 = pneg %p119
        %s179 = sand.u32 %s109, 1
        %s180 = scalar_lea.sflag [#allocation3], %s179
        %s181 = sand.u32 %s109, 1
        %s182 = smul.addr %s181, 8
        %s183 = scalar_lea.vmem [#allocation2], %s182
        %p184 = scmp.lt.s32.totalorder %s21, 1
        %s185 = scalar_select %p184, %s21, 1
        %p186 = scmp.lt.s32.totalorder %s22, 0
        %s187 = scalar_select %p186, %s22, 0
        %s188 = sadd.s32 %s187, %s185
        %s189 = smul.addr %s188, 8
        %s190 = scalar_lea.vmem %s0, %s189
        %v191 = vld [vmem:[%s190] sm:$0xff]
        %vm192 = vcmask 261120
        %v193 = vsel %vm192, %v191, 0.0
        %v194 = vrot.slane %v193, 4
        %v195 = vadd.f32 %v193, %v194
        %v196 = vrot.slane %v195, 2
        %v197 = vadd.f32 %v195, %v196
        %v198 = vrot.slane %v197, 1
        %v199 = vadd.f32 %v197, %v198
        %v200 = vmul.f32 %v191, %v191
        %v201 = vsel %vm192, %v200, 0.0
        %v202 = vrot.slane %v201, 4
        %v203 = vadd.f32 %v201, %v202
        %v204 = vrot.slane %v203, 2
        %v205 = vadd.f32 %v203, %v204
        %v206 = vrot.slane %v205, 1
        %v207 = vadd.f32 %v205, %v206
        %v208 = vmul.f32 %v199, 0.125
        %v209 = vmul.f32 %v207, 0.125
        %v210 = vmul.f32 %v208, %v208
        %v211 = vsub.f32 %v209, %v210
        %v212 = vmax.f32 %v211, 0.0
        %v213 = vadd.f32 %v212, 1e-05
        %v214 = vrsqrt.pop %v213
        %v215 = vld [vmem:[%s1] sm:$0xff]
        %v216 = vld [vmem:[%s2] sm:$0xff]
        %v217 = vsub.f32 %v191, %v208
        %v218 = vmul.f32 %v217, %v214
        %220 = vset.pattern.permute.xlu0 0
        %221 = vperm.xlu0 %220, %v215
        %v222 = vpop.permute.xlu0 %221
        %v224 = vmul.f32 %v218, %v222
        %226 = vset.pattern.permute.xlu0 0
        %227 = vperm.xlu0 %226, %v216
        %v228 = vpop.permute.xlu0 %227
        %v230 = vadd.f32 %v224, %v228
        %231 = vst.msk [vmem:[%s183] sm:$0xff] %vm192, %v230
        %s232 = sand.u32 %s109, 1
        %s233 = scalar_lea.sflag [#allocation3], %s232
        %s234 = sand.u32 %s109, 1
        %s235 = smul.addr %s234, 8
        %s236 = scalar_lea.vmem [#allocation2], %s235
        // Predicated region
        $region33: #{per_feature_norm.1} parent=31 // pred_check
          %p237 = pneg %p119
        $region34: #{per_feature_norm.1} parent=31 // pred_check_branch
          %239 = sbr.rel (%p237) target = $region36
        $region35: #{per_feature_norm.1} parent=31 // pred_region
          %s241 = ssub.s32 128, 128
          %242 = vsyncadd %s233, %s241
          %s243 = sadd.s32 %s22, %s21
          %s244 = smul.addr %s243, 128
          %s245 = scalar_lea.hbm %s3, %s244
          %s247 = sshll.u32 %s236, 4
          %s248 = int_to_ptr.vmem [resolvable:$true] %s247
          %250 = dma.vmem_to_hbm [thread:$0]  %s248, 128, %s245, %s233
        $region36: #{per_feature_norm.1} parent=31 // pred_fallthru
          _
      $region32: #{per_feature_norm.1} parent=5 // pred_fallthru
        _
      %p251 = scmp.le.s32.totalorder 2, %s12
      // Predicated region
      $region37: #{per_feature_norm.1} parent=5 // pred_check
        %p252 = pneg %p251
      $region38: #{per_feature_norm.1} parent=5 // pred_check_branch
        %254 = sbr.rel (%p252) target = $region40
      $region39: #{per_feature_norm.1} parent=5 // pred_region
        %s255 = ssub.s32 %s12, 2
        // Predicated region
        $region41: #{per_feature_norm.1} parent=39 // pred_check
          %p256 = pneg %p125
        $region42: #{per_feature_norm.1} parent=39 // pred_check_branch
          %258 = sbr.rel (%p256) target = $region44
        $region43: #{per_feature_norm.1} parent=39 // pred_region
          %s259 = sand.u32 %s110, 1
          %s260 = scalar_lea.sflag [#allocation3], %s259
          %s261 = sand.u32 %s110, 1
          %s262 = smul.addr %s261, 8
          %s263 = scalar_lea.vmem [#allocation2], %s262
          %264 = dma.done %s260, 128
        $region44: #{per_feature_norm.1} parent=39 // pred_fallthru
          _
      $region40: #{per_feature_norm.1} parent=5 // pred_fallthru
        _
    $region6: #{per_feature_norm.1} parent=1 // loop_footer
      %s16 = sadd.s32 1, %s12
    $region7: #{per_feature_norm.1} parent=1 // loop_footer_branch
      %11 = sbr.rel target = $region3
    $region8: #{per_feature_norm.1} parent=1 // loop_exit
      _
    %265 = vsyncpa [#allocation3], 1
    %s266 = scalar_lea.sflag [#allocation3], 1
    %267 = vsyncpa %s266, 1

</llo_original>
